<compile_context>
chip_gen: v7x
topology: tpu7x:2x2x1
jax: 0.10.0
libtpu: 0.0.40
codegen_flags: <defaults>
</compile_context>

<pallas_src>
import math
import jax
import jax.numpy as jnp
from jax.experimental import pallas as pl
from jax.experimental.pallas import tpu as pltpu

FC_DIM = 64
OUT_DIM = 10
_PACKED_K = 2 * FC_DIM     # 128 lanes: two 64-d feature rows packed per vreg row
_PACKED_N = 2 * OUT_DIM    # 20 output lanes per packed row


def _linear_kernel(x_ref, w_ref, o_ref):
    # x_ref: (TR, K), w_ref: (K, N) (pre-transposed/packed at init), o_ref: (TR, N).
    o_ref[...] = jnp.dot(
        x_ref[...], w_ref[...], preferred_element_type=jnp.float32
    ).astype(o_ref.dtype)


def pack_weight(weight):
    """Hoist all weight layout work to init time (runs once, never per step).

    weight: (10, 64) float -- same layout as torch nn.Linear(64, 10, bias=False).weight
    Returns dict with:
      w_t:   (64, 10)  == weight.T                       (fallback, odd batch)
      w_blk: (128, 20) block-diagonal [[W^T, 0], [0, W^T]] (lane-packed path)
    """
    w = jnp.asarray(weight)
    assert w.shape == (OUT_DIM, FC_DIM)
    w_t = w.T
    w_blk = jnp.zeros((_PACKED_K, _PACKED_N), w_t.dtype)
    w_blk = w_blk.at[:FC_DIM, :OUT_DIM].set(w_t)
    w_blk = w_blk.at[FC_DIM:, OUT_DIM:].set(w_t)
    return {"w_t": w_t, "w_blk": w_blk}


def _tpu_defaults():
    """Generation-aware batch tile (rows of the ORIGINAL x) and VMEM limit."""
    try:
        vmem_bytes = int(pltpu.get_tpu_info().vmem_capacity_bytes)
    except Exception:
        vmem_bytes = 128 << 20
    if vmem_bytes >= (100 << 20):        # v5e / v6e: 128 MiB VMEM
        return 32768, 64 << 20           # packed footprint ~32 MiB double-buffered
    else:                                # v7x: 64 MiB VMEM per TensorCore
        return 16384, 40 << 20           # packed footprint ~16 MiB, headroom kept


def _num_tensorcores():
    try:
        info = pltpu.get_tpu_info()
    except Exception:
        return 1
    for name in ("num_cores", "core_count", "tensorcores_per_chip", "num_tensorcores"):
        n = getattr(info, name, None)
        if n is None:
            continue
        try:
            n = int(n)
        except (TypeError, ValueError):
            continue
        if n > 0:
            return n
    return 1


def _dim_semantics(grid_n):
    # Plain "parallel" vs "arbitrary" doesn't change codegen; real 2-TC sharding
    # on v7x needs CORE_PARALLEL. Only request it when >=2 cores exist and there
    # is more than one tile to split.
    if grid_n >= 2 and _num_tensorcores() >= 2:
        return (pltpu.CORE_PARALLEL,)
    return ("parallel",)


def _run_linear(x2, w2, tile_rows, vmem_limit_bytes):
    """x2: (R, K), w2: (K, N) -> (R, N), streamed over the row axis."""
    R, K = x2.shape
    _, N = w2.shape
    if R <= tile_rows:
        tr = R                                 # block == full array dims
    else:
        tr = max(8, (tile_rows // 8) * 8)      # sublane-aligned streamed tile
    grid_n = pl.cdiv(R, tr)
    return pl.pallas_call(
        _linear_kernel,
        out_shape=jax.ShapeDtypeStruct((R, N), x2.dtype),
        grid_spec=pltpu.PrefetchScalarGridSpec(
            num_scalar_prefetch=0,
            grid=(grid_n,),
            in_specs=[
                pl.BlockSpec((tr, K), lambda i: (i, 0)),   # stream x tiles
                pl.BlockSpec((K, N), lambda i: (0, 0)),    # weight resident in VMEM
            ],
            out_specs=pl.BlockSpec((tr, N), lambda i: (i, 0)),
        ),
        compiler_params=pltpu.CompilerParams(
            dimension_semantics=_dim_semantics(grid_n),
            vmem_limit_bytes=vmem_limit_bytes,
        ),
    )(x2, w2)


def mlp_out_ball_forward(x, params, *, tb=None, vmem_limit_bytes=None):
    """Forward pass of MLP_OUT_BALL: returns x @ W^T (no bias).

    x:      (B, 64) float32 activations.
    params: dict from pack_weight(weight), or a raw (10, 64) torch-layout weight.
    """
    # TODO(synk): optionally cast x to bf16 at this boundary (~1.9x on the
    # HBM-read-bound wall clock, f32 accumulation kept) once numerics are signed off.
    if not isinstance(params, dict):
        params = pack_weight(params)
    B, K = x.shape
    assert K == FC_DIM
    auto_tb, auto_vmem = _tpu_defaults()
    if tb is None:
        tb = auto_tb
    if vmem_limit_bytes is None:
        vmem_limit_bytes = auto_vmem

    if B % 2 == 0 and B > 0:
        # Lane-packed path: (B,64) -> (B/2,128) is a metadata-only reshape for
        # row-major f32; the block-diagonal weight computes both packed rows at once.
        xp = x.reshape(B // 2, _PACKED_K)
        out_p = _run_linear(xp, params["w_blk"], max(tb // 2, 1), vmem_limit_bytes)
        return out_p.reshape(B, OUT_DIM)
    # Odd batch: unpacked fallback (avoids a whole-array pad/copy in HBM).
    return _run_linear(x, params["w_t"], tb, vmem_limit_bytes)


def init_params(key):
    # Deterministic init mimicking torch.nn.Linear default
    # (kaiming-uniform: U(-1/sqrt(fan_in), 1/sqrt(fan_in))).
    bound = 1.0 / math.sqrt(FC_DIM)
    return jax.random.uniform(
        key, (OUT_DIM, FC_DIM), dtype=jnp.float32, minval=-bound, maxval=bound
    )


if __name__ == "__main__":
    key = jax.random.PRNGKey(0)
    k_w, k_x = jax.random.split(key)

    weight = init_params(k_w)            # (10, 64) torch nn.Linear layout
    params = pack_weight(weight)         # all weight layout work hoisted to init

    # Small case matching the module's usage (batch of 64-d features).
    x = jax.random.normal(k_x, (8, FC_DIM), jnp.float32)
    out = jax.block_until_ready(mlp_out_ball_forward(x, params))
    ref = x @ weight.T
    assert out.shape == (8, OUT_DIM)
    assert jnp.allclose(out, ref, atol=1e-5, rtol=1e-5)

    # Multi-tile packed streaming path (grid > 1, ragged last block).
    x2 = jax.random.normal(k_x, (20, FC_DIM), jnp.float32)
    out2 = jax.block_until_ready(mlp_out_ball_forward(x2, params, tb=16))
    ref2 = x2 @ weight.T
    assert out2.shape == (20, OUT_DIM)
    assert jnp.allclose(out2, ref2, atol=1e-5, rtol=1e-5)

    # Odd batch exercises the unpacked fallback path.
    x3 = jax.random.normal(k_x, (7, FC_DIM), jnp.float32)
    out3 = jax.block_until_ready(mlp_out_ball_forward(x3, params))
    ref3 = x3 @ weight.T
    assert out3.shape == (7, OUT_DIM)
    assert jnp.allclose(out3, ref3, atol=1e-5, rtol=1e-5)

    print("KERNEL_OK")
</pallas_src>

<mosaic_0001>
module attributes {stable_mosaic.version = 11 : i64} {
  func.func @_linear_kernel(%arg0: i32, %arg1: memref<4x128xf32, #tpu.memory_space<vmem>>, %arg2: memref<128x20xf32, #tpu.memory_space<vmem>>, %arg3: memref<4x20xf32, #tpu.memory_space<vmem>>) attributes {dimension_semantics = [#tpu.dimension_semantics<parallel>], iteration_bounds = array<i64: 1>, scalar_prefetch = 0 : i64, scratch_operands = 0 : i64, tpu.core_type = #tpu.core_type<tc>, window_params = [{transform_indices = @transform_0, window_bounds = array<i64: 4, 128>}, {pipeline_mode = #tpu.pipeline_mode<synchronous>, transform_indices = @transform_1, window_bounds = array<i64: 128, 20>}, {transform_indices = @transform_2, window_bounds = array<i64: 4, 20>}]} {
    %c0 = arith.constant 0 : index
    %c0_0 = arith.constant 0 : index
    %0 = vector.load %arg1[%c0, %c0_0] : memref<4x128xf32, #tpu.memory_space<vmem>>, vector<4x128xf32>
    %c0_1 = arith.constant 0 : index
    %c0_2 = arith.constant 0 : index
    %1 = vector.load %arg2[%c0_1, %c0_2] : memref<128x20xf32, #tpu.memory_space<vmem>>, vector<128x20xf32>
    %cst = arith.constant dense<0.000000e+00> : vector<4x20xf32>
    %2 = tpu.matmul %0, %1, %cst {dimension_numbers = #tpu.dot_dimension_numbers<[1], [0], [0], [1], [0, 0, 1, 1], [], []>} : vector<4x128xf32>, vector<128x20xf32>, vector<4x20xf32> -> vector<4x20xf32>
    %c0_3 = arith.constant 0 : index
    %c0_4 = arith.constant 0 : index
    %3 = vector.load %arg3[%c0_3, %c0_4] : memref<4x20xf32, #tpu.memory_space<vmem>>, vector<4x20xf32>
    tpu.vector_store %arg3[%c0_3, %c0_4], %2 {strides = array<i32>} : memref<4x20xf32, #tpu.memory_space<vmem>>, vector<4x20xf32>,
    return
  }
  func.func @transform_0(%arg0: i32) -> (i32, i32) {
    %c0_i32 = arith.constant 0 : i32
    %c0_i32_0 = arith.constant 0 : i32
    return %arg0, %c0_i32 : i32, i32
  }
  func.func @transform_1(%arg0: i32) -> (i32, i32) {
    %c0_i32 = arith.constant 0 : i32
    %c0_i32_0 = arith.constant 0 : i32
    %c0_i32_1 = arith.constant 0 : i32
    return %c0_i32, %c0_i32_0 : i32, i32
  }
  func.func @transform_2(%arg0: i32) -> (i32, i32) {
    %c0_i32 = arith.constant 0 : i32
    %c0_i32_0 = arith.constant 0 : i32
    return %arg0, %c0_i32 : i32, i32
  }
}

</mosaic_0001>

<llo_original>
// kernel: tpu_custom_call.1
$region0: #{tpu_custom_call.1}
  #allocation0 [shape = 'u32[]', space=smem, size = 0x4, offset = 0x4, fixed_abs, tag = 'smem constant byte address 0x4 - core index']
  #allocation1 [shape = 'u32[144,128]{1,0:T(1,128)}', space=vmem, size = 0x12000, scoped, tag = 'internal scratch']
  %s0 = inlined_call_operand.hbm [shape: f32[4,128], index: 0, kind: input, shape index: {}]
  %s1 = inlined_call_operand.hbm [shape: f32[128,20], index: 1, kind: input, shape index: {}]
  %s2 = inlined_call_operand.hbm [shape: f32[4,20], index: 2, kind: output, shape index: {}]
  %s3 = sld [smem:[#allocation0]]
  $region26: #{tpu_custom_call.1} parent=0
    _
  %s5 = ssub.s32 1, %s3
  %s6 = scalar_select 0, %s5, %s3
  $region1: #{tpu_custom_call.1} parent=0
    #allocation2 [shape = 'u8[2048]{0}', space=vmem, size = 0x800, scoped, tag = 'input window, operand 0, single buffered']
    #allocation3 [shape = 's32[1]{0}', space=sflag, size = 0x4, scoped, tag = 'scoped memory for tpu_custom_call.1']
    #allocation4 [shape = 's32[1]{0}', space=sflag, size = 0x4, scoped, tag = 'scoped memory for tpu_custom_call.1']
    #allocation5 [shape = 'u8[65536]{0}', space=vmem, size = 0x10000, scoped, tag = 'input window, operand 1, single buffered']
    #allocation6 [shape = 's32[1]{0}', space=sflag, size = 0x4, scoped, tag = 'scoped memory for tpu_custom_call.1']
    #allocation7 [shape = 'u8[2048]{0}', space=vmem, size = 0x800, scoped, tag = 'output window, operand 0, single buffered']
    %7 = vsyncpa [#allocation3], 0
    %8 = vsyncpa [#allocation6], 0
    %9 = vsyncpa [#allocation4], 0
    // Predicated region
    $region2: #{tpu_custom_call.1} parent=1 // pred_check
      _
    $region3: #{tpu_custom_call.1} parent=1 // pred_check_branch
      %11 = sbr.rel (0) target = $region5
    $region4: #{tpu_custom_call.1} parent=1 // pred_region
      %s13 = ssub.s32 64, 64
      %14 = vsyncadd [#allocation3], %s13
      %s16 = sshll.u32 [#allocation2], 4
      %s17 = int_to_ptr.vmem [resolvable:$true] %s16
      %19 = dma.hbm_to_vmem [thread:$0]  %s0, 64, %s17, [#allocation3]
    $region5: #{tpu_custom_call.1} parent=1 // pred_fallthru
      _
    // Predicated region
    $region6: #{tpu_custom_call.1} parent=1 // pred_check
      _
    $region7: #{tpu_custom_call.1} parent=1 // pred_check_branch
      %21 = sbr.rel (0) target = $region9
    $region8: #{tpu_custom_call.1} parent=1 // pred_region
      %s23 = ssub.s32 2048, 2048
      %24 = vsyncadd [#allocation6], %s23
      %s25 = sshll.u32 [#allocation5], 4
      %s26 = int_to_ptr.vmem [resolvable:$true] %s25
      %31 = dma.hbm_to_vmem [thread:$0]  %s1, 2048, %s26, [#allocation6], 128, 128, 8
    $region9: #{tpu_custom_call.1} parent=1 // pred_fallthru
      _
    // Predicated region
    $region10: #{tpu_custom_call.1} parent=1 // pred_check
      _
    $region11: #{tpu_custom_call.1} parent=1 // pred_check_branch
      %33 = sbr.rel (0) target = $region13
    $region12: #{tpu_custom_call.1} parent=1 // pred_region
      %34 = dma.done [#allocation3], 64
    $region13: #{tpu_custom_call.1} parent=1 // pred_fallthru
      _
    // Predicated region
    $region14: #{tpu_custom_call.1} parent=1 // pred_check
      _
    $region15: #{tpu_custom_call.1} parent=1 // pred_check_branch
      %36 = sbr.rel (0) target = $region17
    $region16: #{tpu_custom_call.1} parent=1 // pred_region
      %37 = dma.done [#allocation6], 2048
    $region17: #{tpu_custom_call.1} parent=1 // pred_fallthru
      _
    %v38 = vld [vmem:[#allocation2] sm:$0xf]
    %v39 = vld [vmem:[#allocation5] sm:$0xff]
    %v40 = vld [vmem:[#allocation5 + $0x8] sm:$0xff]
    %v41 = vld [vmem:[#allocation5 + $0x10] sm:$0xff]
    %v42 = vld [vmem:[#allocation5 + $0x18] sm:$0xff]
    %v43 = vld [vmem:[#allocation5 + $0x20] sm:$0xff]
    %v44 = vld [vmem:[#allocation5 + $0x28] sm:$0xff]
    %v45 = vld [vmem:[#allocation5 + $0x30] sm:$0xff]
    %v46 = vld [vmem:[#allocation5 + $0x38] sm:$0xff]
    %v47 = vld [vmem:[#allocation5 + $0x40] sm:$0xff]
    %v48 = vld [vmem:[#allocation5 + $0x48] sm:$0xff]
    %v49 = vld [vmem:[#allocation5 + $0x50] sm:$0xff]
    %v50 = vld [vmem:[#allocation5 + $0x58] sm:$0xff]
    %v51 = vld [vmem:[#allocation5 + $0x60] sm:$0xff]
    %v52 = vld [vmem:[#allocation5 + $0x68] sm:$0xff]
    %v53 = vld [vmem:[#allocation5 + $0x70] sm:$0xff]
    %v54 = vld [vmem:[#allocation5 + $0x78] sm:$0xff]
    %55 = vmatprep.subr.mxu0 0.0
    %56 = vmatpush1.msra.mxu0 %v39
    %57 = vmatprep.subr.mxu0 0.0
    %58 = vmatpush1.msra.mxu0 %v40
    %59 = vmatprep.subr.mxu0 0.0
    %60 = vmatpush1.msra.mxu0 %v41
    %61 = vmatprep.subr.mxu0 0.0
    %62 = vmatpush1.msra.mxu0 %v42
    %63 = vmatprep.subr.mxu0 0.0
    %64 = vmatpush1.msra.mxu0 %v43
    %65 = vmatprep.subr.mxu0 0.0
    %66 = vmatpush1.msra.mxu0 %v44
    %67 = vmatprep.subr.mxu0 0.0
    %68 = vmatpush1.msra.mxu0 %v45
    %69 = vmatprep.subr.mxu0 0.0
    %70 = vmatpush1.msra.mxu0 %v46
    %71 = vmatprep.subr.mxu0 0.0
    %72 = vmatpush1.msra.mxu0 %v47
    %73 = vmatprep.subr.mxu0 0.0
    %74 = vmatpush1.msra.mxu0 %v48
    %75 = vmatprep.subr.mxu0 0.0
    %76 = vmatpush1.msra.mxu0 %v49
    %77 = vmatprep.subr.mxu0 0.0
    %78 = vmatpush1.msra.mxu0 %v50
    %79 = vmatprep.subr.mxu0 0.0
    %80 = vmatpush1.msra.mxu0 %v51
    %81 = vmatprep.subr.mxu0 0.0
    %82 = vmatpush1.msra.mxu0 %v52
    %83 = vmatprep.subr.mxu0 0.0
    %84 = vmatpush1.msra.mxu0 %v53
    %85 = vmatprep.subr.mxu0 0.0
    %86 = vmatpush1.msra.mxu0 %v54
    %87 = vmatprep.subr.mxu0 0.0
    %88 = vmatpush1.msra.mxu0 0.0
    %89 = vmatprep.subr.mxu0 0.0
    %90 = vmatpush1.msra.mxu0 0.0
    %91 = vmatprep.subr.mxu0 0.0
    %92 = vmatpush1.msra.mxu0 0.0
    %93 = vmatprep.subr.mxu0 0.0
    %94 = vmatpush1.msra.mxu0 0.0
    %95 = vmatprep.subr.mxu0 0.0
    %96 = vmatpush1.msra.mxu0 0.0
    %97 = vmatprep.subr.mxu0 0.0
    %98 = vmatpush1.msra.mxu0 0.0
    %99 = vmatprep.subr.mxu0 0.0
    %100 = vmatpush1.msra.mxu0 0.0
    %101 = vmatprep.subr.mxu0 0.0
    %102 = vmatpush1.msra.mxu0 0.0
    %103 = vmatprep.subr.mxu0 0.0
    %104 = vmatpush1.msra.mxu0 0.0
    %105 = vmatprep.subr.mxu0 0.0
    %106 = vmatpush1.msra.mxu0 0.0
    %107 = vmatprep.subr.mxu0 0.0
    %108 = vmatpush1.msra.mxu0 0.0
    %109 = vmatprep.subr.mxu0 0.0
    %110 = vmatpush1.msra.mxu0 0.0
    %111 = vmatprep.subr.mxu0 0.0
    %112 = vmatpush1.msra.mxu0 0.0
    %113 = vmatprep.subr.mxu0 0.0
    %114 = vmatpush1.msra.mxu0 0.0
    %115 = vmatprep.subr.mxu0 0.0
    %116 = vmatpush1.msra.mxu0 0.0
    %117 = vmatprep.subr.mxu0 0.0
    %118 = vmatpush1.msra.mxu0 0.0
    %119 = vmatprep.mubr.f32.mxu0 0.0
    %120 = vmatmul.mubr.f32.gmra.mrb[0].mxu0 %v38
    %v121 = vpop.f32.mrb[0].mxu0
    %v122 = vadd.f32 0.0, %v121
    %v123 = vpop.f32.mrb[0].mxu0
    %124 = vdwg.mxu0
    %vm125 = vcmask 158720
    %126 = vst.msk [vmem:[#allocation7] sm:$0xf] %vm125, %v122
    // Predicated region
    $region18: #{tpu_custom_call.1} parent=1 // pred_check
      _
    $region19: #{tpu_custom_call.1} parent=1 // pred_check_branch
      %128 = sbr.rel (0) target = $region21
    $region20: #{tpu_custom_call.1} parent=1 // pred_region
      %s130 = ssub.s32 64, 64
      %131 = vsyncadd [#allocation4], %s130
      %s133 = sshll.u32 [#allocation7], 4
      %s134 = int_to_ptr.vmem [resolvable:$true] %s133
      %136 = dma.vmem_to_hbm [thread:$0]  %s134, 64, %s2, [#allocation4]
    $region21: #{tpu_custom_call.1} parent=1 // pred_fallthru
      _
    // Predicated region
    $region22: #{tpu_custom_call.1} parent=1 // pred_check
      _
    $region23: #{tpu_custom_call.1} parent=1 // pred_check_branch
      %138 = sbr.rel (0) target = $region25
    $region24: #{tpu_custom_call.1} parent=1 // pred_region
      %139 = dma.done [#allocation4], 64
    $region25: #{tpu_custom_call.1} parent=1 // pred_fallthru
      _
    %140 = vsyncpa [#allocation3], 1
    %141 = vsyncpa [#allocation6], 1
    %142 = vsyncpa [#allocation4], 1

</llo_original>
